<compile_context>
chip_gen: v7x
topology: tpu7x:2x2x1
jax: 0.10.0
libtpu: 0.0.40
codegen_flags: <defaults>
</compile_context>

<pallas_src>
import functools
from typing import NamedTuple

import jax
import jax.numpy as jnp
from jax.experimental import pallas as pl
from jax.experimental.pallas import tpu as pltpu

EDGE_TYPES = 3  # consts.edge_types is external; fixed deterministically here.


def _round_up(v, m):
    return ((v + m - 1) // m) * m


class Plan(NamedTuple):
    s_pad: int       # padded sequence length (multiple of ts)
    ts: int          # adjacency row-tile size (multiple of 32)
    h_pad: int       # lane-padded output width (multiple of 128)
    vmem_limit: int  # vmem_limit_bytes for CompilerParams


def make_plan(seq_len, out_features, edge_types,
              vmem_block_budget=None, row_tile_cap=None):
    """Derive tiling from a per-generation VMEM budget."""
    kind = ""
    try:
        kind = jax.devices()[0].device_kind.lower()
    except Exception:
        pass
    small_vmem = "v7" in kind  # v7x: 64 MiB VMEM / TensorCore; v5e/v6e: 128 MiB
    if vmem_block_budget is None:
        vmem_block_budget = (28 if small_vmem else 80) * 1024 * 1024
    if row_tile_cap is None:
        row_tile_cap = 512 if small_vmem else 1024

    h_pad = _round_up(max(out_features, 1), 128)
    s32 = _round_up(max(seq_len, 1), 32)

    def working_set(ts, s_pad):
        adj = 2 * edge_types * ts * s_pad           # int8 adj tile, double-buffered
        gh = 2 * edge_types * s_pad * h_pad * 2     # bf16 gh (per batch), double-buffered
        out = 2 * ts * h_pad * 4                    # f32 out tile, double-buffered
        body = ts * h_pad * 4 + ts * s_pad * 6      # acc + int8->f32->bf16 temporaries
        return adj + gh + out + body

    ts = max(32, (min(s32, row_tile_cap) // 32) * 32)
    while ts > 32 and working_set(ts, _round_up(s32, ts)) > vmem_block_budget:
        ts -= 32
    s_pad = _round_up(s32, ts)
    vmem_limit = min(vmem_block_budget + 12 * 1024 * 1024,
                     (40 if small_vmem else 100) * 1024 * 1024)
    return Plan(s_pad=s_pad, ts=ts, h_pad=h_pad, vmem_limit=vmem_limit)


def prepare_adjacency(adj, plan, storage_dtype=jnp.int8):
    """One-time per-graph step: zero-pad adjacency to (B, E, S_pad, S_pad) and cast
    to the compact HBM storage dtype.  int8 is exact for the binary adjacency this
    model uses; use jnp.bfloat16 / jnp.float32 for weighted graphs.
    Reuse the result across layers / steps -- do NOT redo this per forward pass."""
    B, E, S, _ = adj.shape
    pad = plan.s_pad - S
    adj = jnp.pad(adj, ((0, 0), (0, 0), (0, pad), (0, pad)))
    return adj.astype(storage_dtype)


# ----------------------------- pass 1: projection ---------------------------------
def _project_kernel(x_ref, wg_ref, bg_ref, wc_ref, bc_ref, gh_ref):
    """gh[b, e, row_tile] = (sigmoid(x @ Wg[e] + bg[e]) * (x @ Wc[e] + bc[e])) -> bf16."""
    e = pl.program_id(1)
    x = x_ref[...]                                                 # (TS, Hin) f32
    # Gate logits on the VPU/XLU (no 1-wide MXU matmul).
    gate = jax.nn.sigmoid(
        jnp.sum(x * wg_ref[...], axis=-1, keepdims=True) + bg_ref[e])
    h = jnp.dot(x, wc_ref[...], preferred_element_type=jnp.float32) + bc_ref[...]
    gh_ref[...] = (gate * h).astype(jnp.bfloat16)


# ----------------------------- pass 2: aggregation --------------------------------
def _aggregate_kernel(adj_ref, gh_ref, out_ref):
    """out[b, row_tile] = relu(sum_e adj[b, e, row_tile, :] @ gh[b, e])."""
    edge_types = adj_ref.shape[0]

    def edge_matmul(e):
        # int8 -> f32 -> bf16 upcast (cheap, hides under the adj DMA), bf16 MXU matmul
        # with f32 accumulation.
        a = adj_ref[e].astype(jnp.float32).astype(jnp.bfloat16)   # (TS, S_pad)
        return jnp.dot(a, gh_ref[e], preferred_element_type=jnp.float32)

    acc = edge_matmul(0)
    for e in range(1, edge_types):          # static unroll; E is small
        acc = acc + edge_matmul(e)
    out_ref[...] = jnp.maximum(acc, 0.0)


@functools.partial(jax.jit, static_argnames=("plan",))
def graph_convolution(x, adj_prepared, wg, bg, wc, bc, plan):
    """x: (B, S, Hin) f32; adj_prepared: (B, E, S_pad, S_pad) int8 (prepare_adjacency);
    wg: (E, Hin, 1); bg: (E, 1, 1); wc: (E, Hin, Hout); bc: (E, 1, Hout).
    Returns (B, S, Hout) f32."""
    B, S, Hin = x.shape
    E = adj_prepared.shape[1]
    Hout = wc.shape[-1]
    S_pad, TS, Hpad = plan.s_pad, plan.ts, plan.h_pad
    n_tiles = S_pad // TS

    # Layout plumbing on the SMALL arrays only (adj is already prepared).
    x_p = jnp.pad(x.astype(jnp.float32), ((0, 0), (0, S_pad - S), (0, 0)))
    wg_row = jnp.transpose(wg, (0, 2, 1)).astype(jnp.float32)          # (E, 1, Hin)
    bg_s = bg.reshape(E).astype(jnp.float32)                           # (E,)  -> SMEM
    wc_p = jnp.pad(wc.astype(jnp.float32), ((0, 0), (0, 0), (0, Hpad - Hout)))
    bc_p = jnp.pad(bc.astype(jnp.float32), ((0, 0), (0, 0), (0, Hpad - Hout)))

    # ---- pass 1: gh = gate * (x @ Wc + bc), once per (batch, edge type, row tile)
    gh = pl.pallas_call(
        _project_kernel,
        out_shape=jax.ShapeDtypeStruct((B, E, S_pad, Hpad), jnp.bfloat16),
        grid_spec=pltpu.PrefetchScalarGridSpec(
            num_scalar_prefetch=0,
            grid=(B, E, n_tiles),
            in_specs=[
                pl.BlockSpec((None, TS, Hin), lambda b, e, i: (b, i, 0)),     # x tile
                pl.BlockSpec((None, 1, Hin), lambda b, e, i: (e, 0, 0)),      # Wg row
                pl.BlockSpec(memory_space=pltpu.MemorySpace.SMEM),            # bg (E,)
                pl.BlockSpec((None, Hin, Hpad), lambda b, e, i: (e, 0, 0)),   # Wc
                pl.BlockSpec((None, 1, Hpad), lambda b, e, i: (e, 0, 0)),     # bc
            ],
            out_specs=pl.BlockSpec((None, None, TS, Hpad),
                                   lambda b, e, i: (b, e, i, 0)),
        ),
        compiler_params=pltpu.CompilerParams(
            dimension_semantics=("parallel", "parallel", "parallel"),
            vmem_limit_bytes=plan.vmem_limit,
        ),
        cost_estimate=pl.CostEstimate(
            flops=int(2 * B * E * S_pad * Hin * Hpad + 4 * B * E * S_pad * Hpad),
            transcendentals=int(B * E * S_pad),
            bytes_accessed=int(B * E * S_pad * Hin * 4
                               + E * Hin * (Hpad + 2) * 4
                               + B * E * S_pad * Hpad * 2),
        ),
    )(x_p, wg_row, bg_s, wc_p, bc_p)

    # ---- pass 2: row-tiled adjacency aggregation  out = relu(sum_e adj_e @ gh_e)
    out = pl.pallas_call(
        _aggregate_kernel,
        out_shape=jax.ShapeDtypeStruct((B, S_pad, Hpad), jnp.float32),
        grid_spec=pltpu.PrefetchScalarGridSpec(
            num_scalar_prefetch=0,
            grid=(B, n_tiles),
            in_specs=[
                # adjacency row tile for all edge types: (E, TS, S_pad) int8
                pl.BlockSpec((None, E, TS, S_pad), lambda b, i: (b, 0, i, 0)),
                # per-batch projected features, resident across row tiles
                pl.BlockSpec((None, E, S_pad, Hpad), lambda b, i: (b, 0, 0, 0)),
            ],
            out_specs=pl.BlockSpec((None, TS, Hpad), lambda b, i: (b, i, 0)),
        ),
        compiler_params=pltpu.CompilerParams(
            dimension_semantics=("parallel", "parallel"),
            vmem_limit_bytes=plan.vmem_limit,
        ),
        cost_estimate=pl.CostEstimate(
            flops=int(2 * B * E * S_pad * S_pad * Hpad),
            transcendentals=0,
            bytes_accessed=int(B * E * S_pad * S_pad                 # adj (int8)
                               + B * E * S_pad * Hpad * 2            # gh (bf16)
                               + B * S_pad * Hpad * 4),              # out (f32)
        ),
    )(adj_prepared, gh)

    return out[:, :S, :Hout]


def _reference(x, adj, wg, bg, wc, bc):
    """Pure-JAX f32 replica of the PyTorch forward (for verification)."""
    E = adj.shape[1]
    ts = []
    for i in range(E):
        gate = jax.nn.sigmoid(x @ wg[i] + bg[i])                 # (B, S, 1)
        adj_hat = adj[:, i] * jnp.swapaxes(gate, -2, -1)         # (B, S, S)
        ts.append(adj_hat @ (x @ wc[i] + bc[i]))                 # (B, S, Hout)
    return jax.nn.relu(jnp.stack(ts).sum(axis=0))


if __name__ == "__main__":
    B, S, Hin, Hout, E = 2, 8, 32, 32, EDGE_TYPES

    key = jax.random.PRNGKey(0)
    kx, kadj, kwg, kbg, kwc, kbc = jax.random.split(key, 6)

    x = jax.random.normal(kx, (B, S, Hin), dtype=jnp.float32)
    adj = (jax.random.uniform(kadj, (B, E, S, S)) > 0.6).astype(jnp.float32)

    # nn.Linear default init: U(-1/sqrt(in_features), 1/sqrt(in_features))
    bound = 1.0 / (Hin ** 0.5)
    wg = jax.random.uniform(kwg, (E, Hin, 1), minval=-bound, maxval=bound, dtype=jnp.float32)
    bg = jax.random.uniform(kbg, (E, 1, 1), minval=-bound, maxval=bound, dtype=jnp.float32)
    wc = jax.random.uniform(kwc, (E, Hin, Hout), minval=-bound, maxval=bound, dtype=jnp.float32)
    bc = jax.random.uniform(kbc, (E, 1, Hout), minval=-bound, maxval=bound, dtype=jnp.float32)

    plan = make_plan(seq_len=S, out_features=Hout, edge_types=E)
    # One-time per-graph pad + int8 cast (binary adjacency -> exact), reused across layers.
    adj_prepared = jax.block_until_ready(prepare_adjacency(adj, plan))

    out = graph_convolution(x, adj_prepared, wg, bg, wc, bc, plan)
    out = jax.block_until_ready(out)

    ref = _reference(x, adj, wg, bg, wc, bc)
    assert out.shape == (B, S, Hout)
    # Tolerance covers the intentional bf16 quantization of gh feeding the
    # f32-accumulating MXU matmul (adjacency itself is binary -> exact in int8).
    assert jnp.allclose(out, ref, atol=3e-2, rtol=3e-2), "mismatch vs reference"

    print("KERNEL_OK")
</pallas_src>

<mosaic_0001>
module attributes {stable_mosaic.version = 11 : i64} {
  func.func @_project_kernel(%arg0: i32, %arg1: i32, %arg2: i32, %arg3: memref<1x32x32xf32, #tpu.memory_space<vmem>>, %arg4: memref<1x1x32xf32, #tpu.memory_space<vmem>>, %arg5: memref<3xf32, #tpu.memory_space<smem>>, %arg6: memref<1x32x128xf32, #tpu.memory_space<vmem>>, %arg7: memref<1x1x128xf32, #tpu.memory_space<vmem>>, %arg8: memref<1x1x32x128xbf16, #tpu.memory_space<vmem>>) attributes {dimension_semantics = [#tpu.dimension_semantics<parallel>, #tpu.dimension_semantics<parallel>, #tpu.dimension_semantics<parallel>], iteration_bounds = array<i64: 2, 3, 1>, scalar_prefetch = 0 : i64, scratch_operands = 0 : i64, tpu.core_type = #tpu.core_type<tc>, window_params = [{transform_indices = @transform_0, window_bounds = array<i64: 1, 32, 32>}, {transform_indices = @transform_1, window_bounds = array<i64: 1, 1, 32>}, {transform_indices = @transform_2, window_bounds = array<i64: 3>}, {transform_indices = @transform_3, window_bounds = array<i64: 1, 32, 128>}, {transform_indices = @transform_4, window_bounds = array<i64: 1, 1, 128>}, {transform_indices = @transform_5, window_bounds = array<i64: 1, 1, 32, 128>}]} {
    %c0 = arith.constant 0 : index
    %c0_0 = arith.constant 0 : index
    %c0_1 = arith.constant 0 : index
    %0 = vector.load %arg3[%c0, %c0_0, %c0_1] : memref<1x32x32xf32, #tpu.memory_space<vmem>>, vector<1x32x32xf32>
    %1 = vector.shape_cast %0 : vector<1x32x32xf32> to vector<32x32xf32>
    %c0_2 = arith.constant 0 : index
    %c0_3 = arith.constant 0 : index
    %c0_4 = arith.constant 0 : index
    %2 = vector.load %arg4[%c0_2, %c0_3, %c0_4] : memref<1x1x32xf32, #tpu.memory_space<vmem>>, vector<1x1x32xf32>
    %3 = vector.shape_cast %2 : vector<1x1x32xf32> to vector<1x32xf32>
    %4 = vector.broadcast %3 : vector<1x32xf32> to vector<32x32xf32>
    %5 = arith.mulf %1, %4 : vector<32x32xf32>
    %cst = arith.constant dense<0.000000e+00> : vector<32xf32>
    %6 = vector.multi_reduction <add>, %5, %cst [1] : vector<32x32xf32> to vector<32xf32>
    %7 = vector.shape_cast %6 : vector<32xf32> to vector<32x1xf32>
    %8 = arith.index_cast %arg1 : i32 to index
    %9 = memref.load %arg5[%8] : memref<3xf32, #tpu.memory_space<smem>>
    %10 = vector.broadcast %9 : f32 to vector<32x1xf32>
    %11 = arith.addf %7, %10 : vector<32x1xf32>
    %12 = arith.negf %11 : vector<32x1xf32>
    %13 = math.exp %12 : vector<32x1xf32>
    %cst_5 = arith.constant 1.000000e+00 : f32
    %14 = vector.broadcast %cst_5 : f32 to vector<32x1xf32>
    %15 = arith.addf %14, %13 : vector<32x1xf32>
    %16 = arith.divf %14, %15 : vector<32x1xf32>
    %c0_6 = arith.constant 0 : index
    %c0_7 = arith.constant 0 : index
    %c0_8 = arith.constant 0 : index
    %17 = vector.load %arg6[%c0_6, %c0_7, %c0_8] : memref<1x32x128xf32, #tpu.memory_space<vmem>>, vector<1x32x128xf32>
    %18 = vector.shape_cast %17 : vector<1x32x128xf32> to vector<32x128xf32>
    %cst_9 = arith.constant dense<0.000000e+00> : vector<32x128xf32>
    %19 = tpu.matmul %1, %18, %cst_9 {dimension_numbers = #tpu.dot_dimension_numbers<[1], [0], [0], [1], [0, 0, 1, 1], [], []>} : vector<32x32xf32>, vector<32x128xf32>, vector<32x128xf32> -> vector<32x128xf32>
    %c0_10 = arith.constant 0 : index
    %c0_11 = arith.constant 0 : index
    %c0_12 = arith.constant 0 : index
    %20 = vector.load %arg7[%c0_10, %c0_11, %c0_12] : memref<1x1x128xf32, #tpu.memory_space<vmem>>, vector<1x1x128xf32>
    %21 = vector.shape_cast %20 : vector<1x1x128xf32> to vector<1x128xf32>
    %22 = vector.broadcast %21 : vector<1x128xf32> to vector<32x128xf32>
    %23 = arith.addf %19, %22 : vector<32x128xf32>
    %24 = vector.broadcast %16 : vector<32x1xf32> to vector<32x128xf32>
    %25 = arith.mulf %24, %23 : vector<32x128xf32>
    %26 = arith.truncf %25 : vector<32x128xf32> to vector<32x128xbf16>
    %c0_13 = arith.constant 0 : index
    %c0_14 = arith.constant 0 : index
    %c0_15 = arith.constant 0 : index
    %c0_16 = arith.constant 0 : index
    %27 = vector.load %arg8[%c0_13, %c0_14, %c0_15, %c0_16] : memref<1x1x32x128xbf16, #tpu.memory_space<vmem>>, vector<1x1x32x128xbf16>
    %28 = vector.shape_cast %27 : vector<1x1x32x128xbf16> to vector<32x128xbf16>
    %29 = vector.shape_cast %26 : vector<32x128xbf16> to vector<1x1x32x128xbf16>
    tpu.vector_store %arg8[%c0_13, %c0_14, %c0_15, %c0_16], %29 {strides = array<i32>} : memref<1x1x32x128xbf16, #tpu.memory_space<vmem>>, vector<1x1x32x128xbf16>,
    return
  }
  func.func @transform_0(%arg0: i32, %arg1: i32, %arg2: i32) -> (i32, i32, i32) {
    %c0_i32 = arith.constant 0 : i32
    %c0_i32_0 = arith.constant 0 : i32
    return %arg0, %arg2, %c0_i32 : i32, i32, i32
  }
  func.func @transform_1(%arg0: i32, %arg1: i32, %arg2: i32) -> (i32, i32, i32) {
    %c0_i32 = arith.constant 0 : i32
    %c0_i32_0 = arith.constant 0 : i32
    %c0_i32_1 = arith.constant 0 : i32
    return %arg1, %c0_i32, %c0_i32_0 : i32, i32, i32
  }
  func.func @transform_2(%arg0: i32, %arg1: i32, %arg2: i32) -> i32 {
    %c0_i32 = arith.constant 0 : i32
    %c0_i32_0 = arith.constant 0 : i32
    return %c0_i32 : i32
  }
  func.func @transform_3(%arg0: i32, %arg1: i32, %arg2: i32) -> (i32, i32, i32) {
    %c0_i32 = arith.constant 0 : i32
    %c0_i32_0 = arith.constant 0 : i32
    %c0_i32_1 = arith.constant 0 : i32
    return %arg1, %c0_i32, %c0_i32_0 : i32, i32, i32
  }
  func.func @transform_4(%arg0: i32, %arg1: i32, %arg2: i32) -> (i32, i32, i32) {
    %c0_i32 = arith.constant 0 : i32
    %c0_i32_0 = arith.constant 0 : i32
    %c0_i32_1 = arith.constant 0 : i32
    return %arg1, %c0_i32, %c0_i32_0 : i32, i32, i32
  }
  func.func @transform_5(%arg0: i32, %arg1: i32, %arg2: i32) -> (i32, i32, i32, i32) {
    %c0_i32 = arith.constant 0 : i32
    %c0_i32_0 = arith.constant 0 : i32
    return %arg0, %arg1, %arg2, %c0_i32 : i32, i32, i32, i32
  }
}

module attributes {stable_mosaic.version = 11 : i64} {
  func.func @_aggregate_kernel(%arg0: i32, %arg1: i32, %arg2: memref<1x3x32x32xi8, #tpu.memory_space<vmem>>, %arg3: memref<1x3x32x128xbf16, #tpu.memory_space<vmem>>, %arg4: memref<1x32x128xf32, #tpu.memory_space<vmem>>) attributes {dimension_semantics = [#tpu.dimension_semantics<parallel>, #tpu.dimension_semantics<parallel>], iteration_bounds = array<i64: 2, 1>, scalar_prefetch = 0 : i64, scratch_operands = 0 : i64, tpu.core_type = #tpu.core_type<tc>, window_params = [{transform_indices = @transform_0, window_bounds = array<i64: 1, 3, 32, 32>}, {transform_indices = @transform_1, window_bounds = array<i64: 1, 3, 32, 128>}, {transform_indices = @transform_2, window_bounds = array<i64: 1, 32, 128>}]} {
    %c0 = arith.constant 0 : index
    %c0_0 = arith.constant 0 : index
    %c0_1 = arith.constant 0 : index
    %c0_2 = arith.constant 0 : index
    %0 = vector.load %arg2[%c0, %c0_0, %c0_1, %c0_2] : memref<1x3x32x32xi8, #tpu.memory_space<vmem>>, vector<1x1x32x32xi8>
    %1 = vector.shape_cast %0 : vector<1x1x32x32xi8> to vector<32x32xi8>
    %2 = arith.sitofp %1 : vector<32x32xi8> to vector<32x32xf32>
    %3 = arith.truncf %2 : vector<32x32xf32> to vector<32x32xbf16>
    %c0_3 = arith.constant 0 : index
    %c0_4 = arith.constant 0 : index
    %c0_5 = arith.constant 0 : index
    %c0_6 = arith.constant 0 : index
    %4 = vector.load %arg3[%c0_3, %c0_4, %c0_5, %c0_6] : memref<1x3x32x128xbf16, #tpu.memory_space<vmem>>, vector<1x1x32x128xbf16>
    %5 = vector.shape_cast %4 : vector<1x1x32x128xbf16> to vector<32x128xbf16>
    %cst = arith.constant dense<0.000000e+00> : vector<32x128xf32>
    %6 = tpu.matmul %3, %5, %cst {dimension_numbers = #tpu.dot_dimension_numbers<[1], [0], [0], [1], [0, 0, 1, 1], [], []>} : vector<32x32xbf16>, vector<32x128xbf16>, vector<32x128xf32> -> vector<32x128xf32>
    %c0_7 = arith.constant 0 : index
    %c1 = arith.constant 1 : index
    %c0_8 = arith.constant 0 : index
    %c0_9 = arith.constant 0 : index
    %7 = vector.load %arg2[%c0_7, %c1, %c0_8, %c0_9] : memref<1x3x32x32xi8, #tpu.memory_space<vmem>>, vector<1x1x32x32xi8>
    %8 = vector.shape_cast %7 : vector<1x1x32x32xi8> to vector<32x32xi8>
    %9 = arith.sitofp %8 : vector<32x32xi8> to vector<32x32xf32>
    %10 = arith.truncf %9 : vector<32x32xf32> to vector<32x32xbf16>
    %c0_10 = arith.constant 0 : index
    %c1_11 = arith.constant 1 : index
    %c0_12 = arith.constant 0 : index
    %c0_13 = arith.constant 0 : index
    %11 = vector.load %arg3[%c0_10, %c1_11, %c0_12, %c0_13] : memref<1x3x32x128xbf16, #tpu.memory_space<vmem>>, vector<1x1x32x128xbf16>
    %12 = vector.shape_cast %11 : vector<1x1x32x128xbf16> to vector<32x128xbf16>
    %cst_14 = arith.constant dense<0.000000e+00> : vector<32x128xf32>
    %13 = tpu.matmul %10, %12, %cst_14 {dimension_numbers = #tpu.dot_dimension_numbers<[1], [0], [0], [1], [0, 0, 1, 1], [], []>} : vector<32x32xbf16>, vector<32x128xbf16>, vector<32x128xf32> -> vector<32x128xf32>
    %14 = arith.addf %6, %13 : vector<32x128xf32>
    %c0_15 = arith.constant 0 : index
    %c2 = arith.constant 2 : index
    %c0_16 = arith.constant 0 : index
    %c0_17 = arith.constant 0 : index
    %15 = vector.load %arg2[%c0_15, %c2, %c0_16, %c0_17] : memref<1x3x32x32xi8, #tpu.memory_space<vmem>>, vector<1x1x32x32xi8>
    %16 = vector.shape_cast %15 : vector<1x1x32x32xi8> to vector<32x32xi8>
    %17 = arith.sitofp %16 : vector<32x32xi8> to vector<32x32xf32>
    %18 = arith.truncf %17 : vector<32x32xf32> to vector<32x32xbf16>
    %c0_18 = arith.constant 0 : index
    %c2_19 = arith.constant 2 : index
    %c0_20 = arith.constant 0 : index
    %c0_21 = arith.constant 0 : index
    %19 = vector.load %arg3[%c0_18, %c2_19, %c0_20, %c0_21] : memref<1x3x32x128xbf16, #tpu.memory_space<vmem>>, vector<1x1x32x128xbf16>
    %20 = vector.shape_cast %19 : vector<1x1x32x128xbf16> to vector<32x128xbf16>
    %cst_22 = arith.constant dense<0.000000e+00> : vector<32x128xf32>
    %21 = tpu.matmul %18, %20, %cst_22 {dimension_numbers = #tpu.dot_dimension_numbers<[1], [0], [0], [1], [0, 0, 1, 1], [], []>} : vector<32x32xbf16>, vector<32x128xbf16>, vector<32x128xf32> -> vector<32x128xf32>
    %22 = arith.addf %14, %21 : vector<32x128xf32>
    %cst_23 = arith.constant 0.000000e+00 : f32
    %23 = vector.broadcast %cst_23 : f32 to vector<32x128xf32>
    %24 = arith.maximumf %22, %23 : vector<32x128xf32>
    %c0_24 = arith.constant 0 : index
    %c0_25 = arith.constant 0 : index
    %c0_26 = arith.constant 0 : index
    %25 = vector.load %arg4[%c0_24, %c0_25, %c0_26] : memref<1x32x128xf32, #tpu.memory_space<vmem>>, vector<1x32x128xf32>
    %26 = vector.shape_cast %25 : vector<1x32x128xf32> to vector<32x128xf32>
    %27 = vector.shape_cast %24 : vector<32x128xf32> to vector<1x32x128xf32>
    tpu.vector_store %arg4[%c0_24, %c0_25, %c0_26], %27 {strides = array<i32>} : memref<1x32x128xf32, #tpu.memory_space<vmem>>, vector<1x32x128xf32>,
    return
  }
  func.func @transform_0(%arg0: i32, %arg1: i32) -> (i32, i32, i32, i32) {
    %c0_i32 = arith.constant 0 : i32
    %c0_i32_0 = arith.constant 0 : i32
    %c0_i32_1 = arith.constant 0 : i32
    return %arg0, %c0_i32, %arg1, %c0_i32_0 : i32, i32, i32, i32
  }
  func.func @transform_1(%arg0: i32, %arg1: i32) -> (i32, i32, i32, i32) {
    %c0_i32 = arith.constant 0 : i32
    %c0_i32_0 = arith.constant 0 : i32
    %c0_i32_1 = arith.constant 0 : i32
    %c0_i32_2 = arith.constant 0 : i32
    return %arg0, %c0_i32, %c0_i32_0, %c0_i32_1 : i32, i32, i32, i32
  }
  func.func @transform_2(%arg0: i32, %arg1: i32) -> (i32, i32, i32) {
    %c0_i32 = arith.constant 0 : i32
    %c0_i32_0 = arith.constant 0 : i32
    return %arg0, %arg1, %c0_i32 : i32, i32, i32
  }
}

</mosaic_0001>

<llo_original>
// kernel: graph_convolution.2
$region0: #{graph_convolution.2}
  #allocation0 [shape = 'u32[]', space=smem, size = 0x4, offset = 0x4, fixed_abs, tag = 'smem constant byte address 0x4 - core index']
  #allocation1 [shape = 'u32[144,128]{1,0:T(1,128)}', space=vmem, size = 0x12000, scoped, tag = 'internal scratch']
  %s0 = inlined_call_operand.hbm [shape: f32[2,32,32], index: 0, kind: input, shape index: {}]
  %s1 = inlined_call_operand.hbm [shape: f32[3,1,32], index: 1, kind: input, shape index: {}]
  %s2 = inlined_call_operand.hbm [shape: f32[3], index: 2, kind: input, shape index: {}]
  %s3 = inlined_call_operand.hbm [shape: f32[3,32,128], index: 3, kind: input, shape index: {}]
  %s4 = inlined_call_operand.hbm [shape: f32[3,1,128], index: 4, kind: input, shape index: {}]
  %s5 = inlined_call_operand.hbm [shape: bf16[2,3,32,128], index: 5, kind: output, shape index: {}]
  %s6 = sld [smem:[#allocation0]]
  $region73: #{graph_convolution.2} parent=0
    _
  %s8 = ssub.s32 1, %s6
  %s9 = scalar_select 0, %s8, %s6
  $region1: #{graph_convolution.2} parent=0
    #allocation2 [shape = 'u8[32768]{0}', space=vmem, size = 0x8000, scoped, tag = 'input window, operand 0']
    #allocation3 [shape = 's32[2]{0}', space=sflag, size = 0x8, scoped, tag = 'scoped memory for graph_convolution.2']
    #allocation4 [shape = 's32[2]{0}', space=sflag, size = 0x8, scoped, tag = 'scoped memory for graph_convolution.2']
    #allocation5 [shape = 's32[2]{0}', space=sflag, size = 0x8, scoped, tag = 'scoped memory for graph_convolution.2']
    #allocation6 [shape = 'u8[1024]{0}', space=vmem, size = 0x400, scoped, tag = 'input window, operand 1']
    #allocation7 [shape = 's32[2]{0}', space=sflag, size = 0x8, scoped, tag = 'scoped memory for graph_convolution.2']
    #allocation8 [shape = 'u8[512]{0}', space=smem, size = 0x200, scoped, tag = 'input window, operand 2, single buffered']
    #allocation9 [shape = 'u8[32768]{0}', space=vmem, size = 0x8000, scoped, tag = 'input window, operand 3']
    #allocation10 [shape = 'u8[1024]{0}', space=vmem, size = 0x400, scoped, tag = 'input window, operand 4']
    #allocation11 [shape = 's32[2]{0}', space=sflag, size = 0x8, scoped, tag = 'scoped memory for graph_convolution.2']
    #allocation12 [shape = 'u8[16384]{0}', space=vmem, size = 0x4000, scoped, tag = 'output window, operand 0']
    %10 = vsyncpa [#allocation3], 0
    %s11 = scalar_lea.sflag [#allocation3], 1
    %12 = vsyncpa %s11, 0
    %13 = vsyncpa [#allocation7], 0
    %s14 = scalar_lea.sflag [#allocation7], 1
    %15 = vsyncpa %s14, 0
    %16 = vsyncpa [#allocation5], 0
    %17 = vsyncpa [#allocation11], 0
    %s18 = scalar_lea.sflag [#allocation11], 1
    %19 = vsyncpa %s18, 0
    %20 = vsyncpa [#allocation4], 0
    %s21 = scalar_lea.sflag [#allocation4], 1
    %22 = vsyncpa %s21, 0
    loop: start=0, step=1, limit=8
    $region2: #{graph_convolution.2} parent=1 // loop_pre_header
      _
    $region3: #{graph_convolution.2} parent=1 // loop_header
      %s24 = sphi 0, %s28
      %p25 = scmp.ge.s32.totalorder %s24, 8
      %s31 = sphi 0, %s50
      %s32 = sphi 0, %s46
      %s33 = sphi 0, %s42
      %s34 = sphi 0, %s31
      %s35 = sphi 0, %s32
      %s36 = sphi 0, %s33
      %s37 = sphi 0, %s34
      %s38 = sphi 0, %s35
      %s39 = sphi 0, %s36
      %s55 = sphi 0, %s57
      %s58 = sphi 0, %s55
      %s59 = sphi 0, %s58
      %s75 = sphi 0, %s59
      %s81 = sphi 0, %s83
      %s84 = sphi 0, %s81
      %s85 = sphi 0, %s84
      %s101 = sphi 0, %s85
      %s105 = sphi 0, %s105
      %s107 = sphi 0, %s105
      %s108 = sphi 0, %s107
      %s122 = sphi 0, %s108
      %s128 = sphi 0, %s130
      %s131 = sphi 0, %s128
      %s132 = sphi 0, %s131
      %s148 = sphi 0, %s132
      %s154 = sphi 0, %s156
      %s157 = sphi 0, %s154
      %s158 = sphi 0, %s157
      %s174 = sphi 0, %s158
      %s184 = sphi 0, %s186
      %s187 = sphi 0, %s184
      %s188 = sphi 0, %s187
      %s204 = sphi 0, %s188
    $region4: #{graph_convolution.2} parent=1 // loop_header_branch
      %27 = sbr.rel (%p25) target = $region8
    $region5: #{graph_convolution.2} parent=1 // loop_body
      %s29 = ssub.s32 %s24, 1
      %s30 = ssub.s32 %s24, 2
      %s40 = sadd.s32 1, %s33
      %p41 = scmp.ge.s32.totalorder %s40, 1
      %s42 = scalar_select %p41, 0, %s40
      %s43 = sadd.s32 1, %s32
      %s44 = scalar_select %p41, %s43, %s32
      %p45 = scmp.ge.s32.totalorder %s44, 3
      %s46 = scalar_select %p45, 0, %s44
      %s47 = sadd.s32 1, %s31
      %s48 = scalar_select %p45, %s47, %s31
      %p49 = scmp.ge.s32.totalorder %s48, 2
      %s50 = scalar_select %p49, 0, %s48
      %s51 = ssub.s32 %s31, %s50
      %s52 = ssub.s32 %s33, %s42
      %s53 = sor.u32 %s51, %s52
      %p54 = scmp.eq.s32.totalorder %s53, 0
      %s56 = sadd.s32 %s55, 1
      %s57 = scalar_select %p54, %s55, %s56
      %p60 = pneg %p54
      %p61 = scmp.eq.s32.totalorder %s24, 5
      %p62 = por %p60, %p61
      %p63 = scmp.ne.s32.totalorder %s55, %s58
      %p64 = scmp.eq.s32.totalorder %s24, 0
      %p65 = por %p63, %p64
      %p66 = scmp.ne.s32.totalorder %s55, %s58
      %p67 = scmp.eq.s32.totalorder %s29, 5
      %p68 = por %p66, %p67
      %p69 = scmp.ne.s32.totalorder %s58, %s59
      %p70 = scmp.eq.s32.totalorder %s29, 0
      %p71 = por %p69, %p70
      %p72 = scmp.ne.s32.totalorder %s58, %s59
      %p73 = scmp.eq.s32.totalorder %s30, 5
      %p74 = por %p72, %p73
      %p76 = scmp.ne.s32.totalorder %s59, %s75
      %p77 = scmp.eq.s32.totalorder %s30, 0
      %p78 = por %p76, %p77
      %s79 = ssub.s32 %s32, %s46
      %p80 = scmp.eq.s32.totalorder %s79, 0
      %s82 = sadd.s32 %s81, 1
      %s83 = scalar_select %p80, %s81, %s82
      %p86 = pneg %p80
      %p87 = scmp.eq.s32.totalorder %s24, 5
      %p88 = por %p86, %p87
      %p89 = scmp.ne.s32.totalorder %s81, %s84
      %p90 = scmp.eq.s32.totalorder %s24, 0
      %p91 = por %p89, %p90
      %p92 = scmp.ne.s32.totalorder %s81, %s84
      %p93 = scmp.eq.s32.totalorder %s29, 5
      %p94 = por %p92, %p93
      %p95 = scmp.ne.s32.totalorder %s84, %s85
      %p96 = scmp.eq.s32.totalorder %s29, 0
      %p97 = por %p95, %p96
      %p98 = scmp.ne.s32.totalorder %s84, %s85
      %p99 = scmp.eq.s32.totalorder %s30, 5
      %p100 = por %p98, %p99
      %p102 = scmp.ne.s32.totalorder %s85, %s101
      %p103 = scmp.eq.s32.totalorder %s30, 0
      %p104 = por %p102, %p103
      %s106 = sadd.s32 %s105, 1
      %p109 = scmp.eq.s32.totalorder %s24, 5
      %p110 = scmp.ne.s32.totalorder %s105, %s107
      %p111 = scmp.eq.s32.totalorder %s24, 0
      %p112 = por %p110, %p111
      %p113 = scmp.ne.s32.totalorder %s105, %s107
      %p114 = scmp.eq.s32.totalorder %s29, 5
      %p115 = por %p113, %p114
      %p116 = scmp.ne.s32.totalorder %s107, %s108
      %p117 = scmp.eq.s32.totalorder %s29, 0
      %p118 = por %p116, %p117
      %p119 = scmp.ne.s32.totalorder %s107, %s108
      %p120 = scmp.eq.s32.totalorder %s30, 5
      %p121 = por %p119, %p120
      %p123 = scmp.ne.s32.totalorder %s108, %s122
      %p124 = scmp.eq.s32.totalorder %s30, 0
      %p125 = por %p123, %p124
      %s126 = ssub.s32 %s32, %s46
      %p127 = scmp.eq.s32.totalorder %s126, 0
      %s129 = sadd.s32 %s128, 1
      %s130 = scalar_select %p127, %s128, %s129
      %p133 = pneg %p127
      %p134 = scmp.eq.s32.totalorder %s24, 5
      %p135 = por %p133, %p134
      %p136 = scmp.ne.s32.totalorder %s128, %s131
      %p137 = scmp.eq.s32.totalorder %s24, 0
      %p138 = por %p136, %p137
      %p139 = scmp.ne.s32.totalorder %s128, %s131
      %p140 = scmp.eq.s32.totalorder %s29, 5
      %p141 = por %p139, %p140
      %p142 = scmp.ne.s32.totalorder %s131, %s132
      %p143 = scmp.eq.s32.totalorder %s29, 0
      %p144 = por %p142, %p143
      %p145 = scmp.ne.s32.totalorder %s131, %s132
      %p146 = scmp.eq.s32.totalorder %s30, 5
      %p147 = por %p145, %p146
      %p149 = scmp.ne.s32.totalorder %s132, %s148
      %p150 = scmp.eq.s32.totalorder %s30, 0
      %p151 = por %p149, %p150
      %s152 = ssub.s32 %s32, %s46
      %p153 = scmp.eq.s32.totalorder %s152, 0
      %s155 = sadd.s32 %s154, 1
      %s156 = scalar_select %p153, %s154, %s155
      %p159 = pneg %p153
      %p160 = scmp.eq.s32.totalorder %s24, 5
      %p161 = por %p159, %p160
      %p162 = scmp.ne.s32.totalorder %s154, %s157
      %p163 = scmp.eq.s32.totalorder %s24, 0
      %p164 = por %p162, %p163
      %p165 = scmp.ne.s32.totalorder %s154, %s157
      %p166 = scmp.eq.s32.totalorder %s29, 5
      %p167 = por %p165, %p166
      %p168 = scmp.ne.s32.totalorder %s157, %s158
      %p169 = scmp.eq.s32.totalorder %s29, 0
      %p170 = por %p168, %p169
      %p171 = scmp.ne.s32.totalorder %s157, %s158
      %p172 = scmp.eq.s32.totalorder %s30, 5
      %p173 = por %p171, %p172
      %p175 = scmp.ne.s32.totalorder %s158, %s174
      %p176 = scmp.eq.s32.totalorder %s30, 0
      %p177 = por %p175, %p176
      %s178 = ssub.s32 %s31, %s50
      %s179 = ssub.s32 %s32, %s46
      %s180 = sor.u32 %s178, %s179
      %s181 = ssub.s32 %s33, %s42
      %s182 = sor.u32 %s180, %s181
      %p183 = scmp.eq.s32.totalorder %s182, 0
      %s185 = sadd.s32 %s184, 1
      %s186 = scalar_select %p183, %s184, %s185
      %p189 = pneg %p183
      %p190 = scmp.eq.s32.totalorder %s24, 5
      %p191 = por %p189, %p190
      %p192 = scmp.ne.s32.totalorder %s184, %s187
      %p193 = scmp.eq.s32.totalorder %s24, 0
      %p194 = por %p192, %p193
      %p195 = scmp.ne.s32.totalorder %s184, %s187
      %p196 = scmp.eq.s32.totalorder %s29, 5
      %p197 = por %p195, %p196
      %p198 = scmp.ne.s32.totalorder %s187, %s188
      %p199 = scmp.eq.s32.totalorder %s29, 0
      %p200 = por %p198, %p199
      %p201 = scmp.ne.s32.totalorder %s187, %s188
      %p202 = scmp.eq.s32.totalorder %s30, 5
      %p203 = por %p201, %p202
      %p205 = scmp.ne.s32.totalorder %s188, %s204
      %p206 = scmp.eq.s32.totalorder %s30, 0
      %p207 = por %p205, %p206
      %p208 = scmp.le.s32.totalorder 1, %s24
      %p209 = scmp.lt.s32.totalorder %s24, 7
      %p210 = pnand %p208, %p209
      %p211 = pneg %p210
      // Predicated region
      $region9: #{graph_convolution.2} parent=5 // pred_check
        _
      $region10: #{graph_convolution.2} parent=5 // pred_check_branch
        %213 = sbr.rel (%p210) target = $region12
      $region11: #{graph_convolution.2} parent=5 // pred_region
        %s214 = ssub.s32 %s24, 1
        // Predicated region
        $region13: #{graph_convolution.2} parent=11 // pred_check
          %p215 = pneg %p118
        $region14: #{graph_convolution.2} parent=11 // pred_check_branch
          %217 = sbr.rel (%p215) target = $region16
        $region15: #{graph_convolution.2} parent=11 // pred_region
          %s219 = ssub.s32 16, 16
          %220 = vsyncadd [#allocation5], %s219
          %223 = dma.hbm_to_smem %s2, 16, [#allocation8], [#allocation5]
        $region16: #{graph_convolution.2} parent=11 // pred_fallthru
          _
      $region12: #{graph_convolution.2} parent=5 // pred_fallthru
        _
      %p224 = scmp.lt.s32.totalorder %s24, 6
      // Predicated region
      $region17: #{graph_convolution.2} parent=5 // pred_check
        %p225 = pneg %p224
      $region18: #{graph_convolution.2} parent=5 // pred_check_branch
        %227 = sbr.rel (%p225) target = $region20
      $region19: #{graph_convolution.2} parent=5 // pred_region
        // Predicated region
        $region21: #{graph_convolution.2} parent=19 // pred_check
          %p228 = pneg %p65
        $region22: #{graph_convolution.2} parent=19 // pred_check_branch
          %230 = sbr.rel (%p228) target = $region24
        $region23: #{graph_convolution.2} parent=19 // pred_region
          %s231 = sand.u32 %s55, 1
          %s232 = scalar_lea.sflag [#allocation3], %s231
          %s233 = sand.u32 %s55, 1
          %s234 = smul.addr %s233, 32
          %s235 = scalar_lea.vmem [#allocation2], %s234
          %s236 = smul.u32 4, %s33
          %s238 = ssub.s32 512, 512
          %239 = vsyncadd %s232, %s238
          %s240 = smul.addr %s31, 4
          %s241 = sadd.s32 %s236, %s240
          %s242 = smul.addr %s241, 128
          %s243 = scalar_lea.hbm %s0, %s242
          %s244 = sshll.u32 %s235, 4
          %s245 = int_to_ptr.vmem [resolvable:$true] %s244
          %250 = dma.hbm_to_vmem [thread:$0]  %s243, 512, %s245, %s232, 128, 128, 8
        $region24: #{graph_convolution.2} parent=19 // pred_fallthru
          _
        // Predicated region
        $region25: #{graph_convolution.2} parent=19 // pred_check
          %p251 = pneg %p91
        $region26: #{graph_convolution.2} parent=19 // pred_check_branch
          %253 = sbr.rel (%p251) target = $region28
        $region27: #{graph_convolution.2} parent=19 // pred_region
          %s254 = sand.u32 %s24, 1
          %s255 = scalar_lea.sflag [#allocation7], %s254
          %s256 = sand.u32 %s81, 1
          %s257 = scalar_lea.vmem [#allocation6], %s256
          %s259 = ssub.s32 16, 16
          %260 = vsyncadd %s255, %s259
          %s261 = smul.addr %s32, 16
          %s262 = scalar_lea.hbm %s1, %s261
          %s264 = sshll.u32 %s257, 4
          %s265 = int_to_ptr.vmem [resolvable:$true] %s264
          %267 = dma.hbm_to_vmem [thread:$0]  %s262, 16, %s265, %s255
        $region28: #{graph_convolution.2} parent=19 // pred_fallthru
          _
        // Predicated region
        $region29: #{graph_convolution.2} parent=19 // pred_check
          %p268 = pneg %p138
        $region30: #{graph_convolution.2} parent=19 // pred_check_branch
          %270 = sbr.rel (%p268) target = $region32
        $region31: #{graph_convolution.2} parent=19 // pred_region
          %s271 = sand.u32 %s24, 1
          %s272 = scalar_lea.sflag [#allocation7], %s271
          %s273 = sand.u32 %s128, 1
          %s274 = smul.addr %s273, 32
          %s275 = scalar_lea.vmem [#allocation9], %s274
          %s277 = ssub.s32 512, 512
          %278 = vsyncadd %s272, %s277
          %s279 = smul.addr %s32, 4
          %s280 = smul.addr %s279, 128
          %s281 = scalar_lea.hbm %s3, %s280
          %s282 = sshll.u32 %s275, 4
          %s283 = int_to_ptr.vmem [resolvable:$true] %s282
          %288 = dma.hbm_to_vmem [thread:$0]  %s281, 512, %s283, %s272, 128, 128, 8
        $region32: #{graph_convolution.2} parent=19 // pred_fallthru
          _
        // Predicated region
        $region33: #{graph_convolution.2} parent=19 // pred_check
          %p289 = pneg %p164
        $region34: #{graph_convolution.2} parent=19 // pred_check_branch
          %291 = sbr.rel (%p289) target = $region36
        $region35: #{graph_convolution.2} parent=19 // pred_region
          %s292 = sand.u32 %s154, 1
          %s293 = scalar_lea.sflag [#allocation11], %s292
          %s294 = sand.u32 %s154, 1
          %s295 = scalar_lea.vmem [#allocation10], %s294
          %s297 = ssub.s32 16, 16
          %298 = vsyncadd %s293, %s297
          %s299 = smul.addr %s32, 16
          %s300 = scalar_lea.hbm %s4, %s299
          %s302 = sshll.u32 %s295, 4
          %s303 = int_to_ptr.vmem [resolvable:$true] %s302
          %305 = dma.hbm_to_vmem [thread:$0]  %s300, 16, %s303, %s293
        $region36: #{graph_convolution.2} parent=19 // pred_fallthru
          _
      $region20: #{graph_convolution.2} parent=5 // pred_fallthru
        _
      %p306 = scmp.le.s32.totalorder 1, %s24
      %p307 = scmp.lt.s32.totalorder %s24, 7
      %p308 = pnand %p306, %p307
      %p309 = pneg %p308
      // Predicated region
      $region37: #{graph_convolution.2} parent=5 // pred_check
        _
      $region38: #{graph_convolution.2} parent=5 // pred_check_branch
        %311 = sbr.rel (%p308) target = $region40
      $region39: #{graph_convolution.2} parent=5 // pred_region
        %s312 = ssub.s32 %s24, 1
        %s313 = sand.u32 %s58, 1
        %s314 = scalar_lea.sflag [#allocation3], %s313
        %s315 = sand.u32 %s58, 1
        %s316 = smul.addr %s315, 32
        %s317 = scalar_lea.vmem [#allocation2], %s316
        // Predicated region
        $region41: #{graph_convolution.2} parent=39 // pred_check
          %p318 = pneg %p71
        $region42: #{graph_convolution.2} parent=39 // pred_check_branch
          %320 = sbr.rel (%p318) target = $region44
        $region43: #{graph_convolution.2} parent=39 // pred_region
          %321 = dma.done %s314, 512
        $region44: #{graph_convolution.2} parent=39 // pred_fallthru
          _
        %s322 = sand.u32 %s29, 1
        %s323 = scalar_lea.sflag [#allocation7], %s322
        %s324 = sand.u32 %s84, 1
        %s325 = scalar_lea.vmem [#allocation6], %s324
        // Predicated region
        $region45: #{graph_convolution.2} parent=39 // pred_check
          %p326 = pneg %p97
        $region46: #{graph_convolution.2} parent=39 // pred_check_branch
          %328 = sbr.rel (%p326) target = $region48
        $region47: #{graph_convolution.2} parent=39 // pred_region
          %329 = dma.done %s323, 16
        $region48: #{graph_convolution.2} parent=39 // pred_fallthru
          _
        // Predicated region
        $region49: #{graph_convolution.2} parent=39 // pred_check
          %p330 = pneg %p118
        $region50: #{graph_convolution.2} parent=39 // pred_check_branch
          %332 = sbr.rel (%p330) target = $region52
        $region51: #{graph_convolution.2} parent=39 // pred_region
          %333 = dma.done [#allocation5], 16
        $region52: #{graph_convolution.2} parent=39 // pred_fallthru
          _
        %s334 = sand.u32 %s29, 1
        %s335 = scalar_lea.sflag [#allocation7], %s334
        %s336 = sand.u32 %s131, 1
        %s337 = smul.addr %s336, 32
        %s338 = scalar_lea.vmem [#allocation9], %s337
        // Predicated region
        $region53: #{graph_convolution.2} parent=39 // pred_check
          %p339 = pneg %p144
        $region54: #{graph_convolution.2} parent=39 // pred_check_branch
          %341 = sbr.rel (%p339) target = $region56
        $region55: #{graph_convolution.2} parent=39 // pred_region
          %342 = dma.done %s335, 512
        $region56: #{graph_convolution.2} parent=39 // pred_fallthru
          _
        %s343 = sand.u32 %s157, 1
        %s344 = scalar_lea.sflag [#allocation11], %s343
        %s345 = sand.u32 %s157, 1
        %s346 = scalar_lea.vmem [#allocation10], %s345
        // Predicated region
        $region57: #{graph_convolution.2} parent=39 // pred_check
          %p347 = pneg %p170
        $region58: #{graph_convolution.2} parent=39 // pred_check_branch
          %349 = sbr.rel (%p347) target = $region60
        $region59: #{graph_convolution.2} parent=39 // pred_region
          %350 = dma.done %s344, 16
        $region60: #{graph_convolution.2} parent=39 // pred_fallthru
          _
        %351 = sfence
        %s352 = sand.u32 %s58, 1
        %s353 = scalar_lea.sflag [#allocation3], %s352
        %s354 = sand.u32 %s58, 1
        %s355 = smul.addr %s354, 32
        %s356 = scalar_lea.vmem [#allocation2], %s355
        %p357 = pneg %p71
        %p358 = pneg %p68
        %s359 = sand.u32 %s29, 1
        %s360 = scalar_lea.sflag [#allocation7], %s359
        %s361 = sand.u32 %s84, 1
        %s362 = scalar_lea.vmem [#allocation6], %s361
        %p363 = pneg %p97
        %p364 = pneg %p94
        %p365 = pneg %p118
        %p366 = pneg %p115
        %s367 = sand.u32 %s29, 1
        %s368 = scalar_lea.sflag [#allocation7], %s367
        %s369 = sand.u32 %s131, 1
        %s370 = smul.addr %s369, 32
        %s371 = scalar_lea.vmem [#allocation9], %s370
        %p372 = pneg %p144
        %p373 = pneg %p141
        %s374 = sand.u32 %s157, 1
        %s375 = scalar_lea.sflag [#allocation11], %s374
        %s376 = sand.u32 %s157, 1
        %s377 = scalar_lea.vmem [#allocation10], %s376
        %p378 = pneg %p170
        %p379 = pneg %p167
        %p380 = pneg %p200
        %p381 = pneg %p197
        %s382 = sand.u32 %s187, 1
        %s383 = scalar_lea.sflag [#allocation4], %s382
        %s384 = sand.u32 %s187, 1
        %s385 = smul.addr %s384, 16
        %s386 = scalar_lea.vmem [#allocation12], %s385
        %s387 = smul.u32 4, %s36
        %s388 = smul.u32 4, %s36
        %v389 = vld [vmem:[%s317] sm:$0xff]
        %v390 = vld [vmem:[%s317 + $0x8] sm:$0xff]
        %v391 = vld [vmem:[%s317 + $0x10] sm:$0xff]
        %v392 = vld [vmem:[%s317 + $0x18] sm:$0xff]
        %v393 = vld [vmem:[%s325] sm:$0x1]
        %v395 = vlaneseq
        %v396 = vshrl.u32 %v395, 7
        %v397 = vsub.s32 0, %v396
        %v398 = vrot.slane %v393, %v397
        %v400 = vmul.f32 %v389, %v398
        %v401 = vmul.f32 %v390, %v398
        %v402 = vmul.f32 %v391, %v398
        %v403 = vmul.f32 %v392, %v398
        %vm404 = vcmask 261120
        %v405 = vsel %vm404, %v400, 0.0
        %406 = vadd.xlane.f32.xlu0 %v405
        %v407 = vpop.xlane.xlu0 %406
        %v408 = vsel %vm404, %v401, 0.0
        %409 = vadd.xlane.f32.xlu0 %v408
        %v410 = vpop.xlane.xlu0 %409
        %v411 = vsel %vm404, %v402, 0.0
        %412 = vadd.xlane.f32.xlu0 %v411
        %v413 = vpop.xlane.xlu0 %412
        %v414 = vsel %vm404, %v403, 0.0
        %415 = vadd.xlane.f32.xlu0 %v414
        %v416 = vpop.xlane.xlu0 %415
        %s417 = sld [smem:[#allocation8 + %s35]]
        %v418 = vstv %s417
        %v419 = vadd.f32 %v407, %v418
        %v420 = vadd.f32 %v410, %v418
        %v421 = vadd.f32 %v413, %v418
        %v422 = vadd.f32 %v416, %v418
        %v423 = vxor.u32 %v419, 2147483648
        %v424 = vxor.u32 %v420, 2147483648
        %v425 = vxor.u32 %v421, 2147483648
        %v426 = vxor.u32 %v422, 2147483648
        %v427 = vmul.f32 %v423, 1.442695
        %v428 = vpow.pop %v427
        %v429 = vmul.f32 %v424, 1.442695
        %v430 = vpow.pop %v429
        %v431 = vmul.f32 %v425, 1.442695
        %v432 = vpow.pop %v431
        %v433 = vmul.f32 %v426, 1.442695
        %v434 = vpow.pop %v433
        %v435 = vadd.f32 %v428, 1.0
        %v436 = vadd.f32 %v430, 1.0
        %v437 = vadd.f32 %v432, 1.0
        %v438 = vadd.f32 %v434, 1.0
        %v439 = vrcp.pop %v435
        %v440 = vmul.f32 1.0, %v439
        %v441 = vrcp.pop %v436
        %v442 = vmul.f32 1.0, %v441
        %v443 = vrcp.pop %v437
        %v444 = vmul.f32 1.0, %v443
        %v445 = vrcp.pop %v438
        %v446 = vmul.f32 1.0, %v445
        %v447 = vld [vmem:[%s338] sm:$0xff]
        %v448 = vld [vmem:[%s338 + $0x8] sm:$0xff]
        %v449 = vld [vmem:[%s338 + $0x10] sm:$0xff]
        %v450 = vld [vmem:[%s338 + $0x18] sm:$0xff]
        %v451 = vld [vmem:[%s346] sm:$0x1]
        %v453 = vlaneseq
        %v454 = vshrl.u32 %v453, 7
        %v455 = vsub.s32 0, %v454
        %v456 = vrot.slane %v451, %v455
        %v459 = vsel %vm404, %v389, 0
        %v462 = vsel %vm404, %v390, 0
        %v465 = vsel %vm404, %v391, 0
        %v468 = vsel %vm404, %v392, 0
        %470 = vmatprep.subr.mxu0 0.0
        %471 = vmatpush1.msra.mxu0 %v447
        %472 = vmatprep.subr.mxu0 0.0
        %473 = vmatpush1.msra.mxu0 %v448
        %474 = vmatprep.subr.mxu0 0.0
        %475 = vmatpush1.msra.mxu0 %v449
        %476 = vmatprep.subr.mxu0 0.0
        %477 = vmatpush1.msra.mxu0 %v450
        %478 = vmatprep.subr.mxu0 0.0
        %479 = vmatpush1.msra.mxu0 0.0
        %480 = vmatprep.subr.mxu0 0.0
        %481 = vmatpush1.msra.mxu0 0.0
        %482 = vmatprep.subr.mxu0 0.0
        %483 = vmatpush1.msra.mxu0 0.0
        %484 = vmatprep.subr.mxu0 0.0
        %485 = vmatpush1.msra.mxu0 0.0
        %486 = vmatprep.subr.mxu0 0.0
        %487 = vmatpush1.msra.mxu0 0.0
        %488 = vmatprep.subr.mxu0 0.0
        %489 = vmatpush1.msra.mxu0 0.0
        %490 = vmatprep.subr.mxu0 0.0
        %491 = vmatpush1.msra.mxu0 0.0
        %492 = vmatprep.subr.mxu0 0.0
        %493 = vmatpush1.msra.mxu0 0.0
        %494 = vmatprep.subr.mxu0 0.0
        %495 = vmatpush1.msra.mxu0 0.0
        %496 = vmatprep.subr.mxu0 0.0
        %497 = vmatpush1.msra.mxu0 0.0
        %498 = vmatprep.subr.mxu0 0.0
        %499 = vmatpush1.msra.mxu0 0.0
        %500 = vmatprep.subr.mxu0 0.0
        %501 = vmatpush1.msra.mxu0 0.0
        %502 = vmatprep.subr.mxu0 0.0
        %503 = vmatpush1.msra.mxu0 0.0
        %504 = vmatprep.subr.mxu0 0.0
        %505 = vmatpush1.msra.mxu0 0.0
        %506 = vmatprep.subr.mxu0 0.0
        %507 = vmatpush1.msra.mxu0 0.0
        %508 = vmatprep.subr.mxu0 0.0
        %509 = vmatpush1.msra.mxu0 0.0
        %510 = vmatprep.subr.mxu0 0.0
        %511 = vmatpush1.msra.mxu0 0.0
        %512 = vmatprep.subr.mxu0 0.0
        %513 = vmatpush1.msra.mxu0 0.0
        %514 = vmatprep.subr.mxu0 0.0
        %515 = vmatpush1.msra.mxu0 0.0
        %516 = vmatprep.subr.mxu0 0.0
        %517 = vmatpush1.msra.mxu0 0.0
        %518 = vmatprep.subr.mxu0 0.0
        %519 = vmatpush1.msra.mxu0 0.0
        %520 = vmatprep.subr.mxu0 0.0
        %521 = vmatpush1.msra.mxu0 0.0
        %522 = vmatprep.subr.mxu0 0.0
        %523 = vmatpush1.msra.mxu0 0.0
        %524 = vmatprep.subr.mxu0 0.0
        %525 = vmatpush1.msra.mxu0 0.0
        %526 = vmatprep.subr.mxu0 0.0
        %527 = vmatpush1.msra.mxu0 0.0
        %528 = vmatprep.subr.mxu0 0.0
        %529 = vmatpush1.msra.mxu0 0.0
        %530 = vmatprep.subr.mxu0 0.0
        %531 = vmatpush1.msra.mxu0 0.0
        %532 = vmatprep.subr.mxu0 0.0
        %533 = vmatpush1.msra.mxu0 0.0
        %534 = vmatprep.mubr.f32.mxu0 0.0
        %535 = vmatmul.mubr.f32.gmra.mrb[0].mxu0 %v459
        %v536 = vpop.f32.mrb[0].mxu0
        %v537 = vadd.f32 %v456, %v536
        %v538 = vpop.f32.mrb[0].mxu0
        %539 = vmatprep.mubr.f32.mxu0 0.0
        %540 = vmatmul.mubr.f32.gmra.mrb[0].mxu0 %v462
        %v541 = vpop.f32.mrb[0].mxu0
        %v542 = vadd.f32 %v456, %v541
        %v543 = vpop.f32.mrb[0].mxu0
        %544 = vmatprep.mubr.f32.mxu0 0.0
        %545 = vmatmul.mubr.f32.gmra.mrb[0].mxu0 %v465
        %v546 = vpop.f32.mrb[0].mxu0
        %v547 = vadd.f32 %v456, %v546
        %v548 = vpop.f32.mrb[0].mxu0
        %549 = vmatprep.mubr.f32.mxu0 0.0
        %550 = vmatmul.mubr.f32.gmra.mrb[0].mxu0 %v468
        %v551 = vpop.f32.mrb[0].mxu0
        %v552 = vadd.f32 %v456, %v551
        %v553 = vpop.f32.mrb[0].mxu0
        %554 = vdwg.mxu0
        %v555 = vmul.f32 %v440, %v537
        %v556 = vmul.f32 %v442, %v542
        %v557 = vmul.f32 %v444, %v547
        %v558 = vmul.f32 %v446, %v552
        %v559 = vpack.c.bf16 %v556, %v555
        %v560 = vpack.c.bf16 %v558, %v557
        %v563 = vunpack.c.l.b16 %v559
        %v564 = vunpack.c.h.b16 %v559
        %v565 = vunpack.c.l.b16 %v560
        %v566 = vunpack.c.h.b16 %v560
        %v567 = vpack.c.b16 %v563, %v563
        %v568 = vpack.c.b16 %v564, %v564
        %v569 = vpack.c.b16 %v565, %v565
        %v570 = vpack.c.b16 %v566, %v566
        %575 = vst [vmem:[%s386] sm:$0xf] %v567
        %576 = vst [vmem:[%s386 + $0x4] sm:$0xf] %v568
        %577 = vst [vmem:[%s386 + $0x8] sm:$0xf] %v569
        %578 = vst [vmem:[%s386 + $0xc] sm:$0xf] %v570
        %s579 = sand.u32 %s187, 1
        %s580 = scalar_lea.sflag [#allocation4], %s579
        %s581 = sand.u32 %s187, 1
        %s582 = smul.addr %s581, 16
        %s583 = scalar_lea.vmem [#allocation12], %s582
        // Predicated region
        $region61: #{graph_convolution.2} parent=39 // pred_check
          %p584 = pneg %p197
        $region62: #{graph_convolution.2} parent=39 // pred_check_branch
          %586 = sbr.rel (%p584) target = $region64
        $region63: #{graph_convolution.2} parent=39 // pred_region
          %s587 = smul.u32 4, %s36
          %s589 = ssub.s32 256, 256
          %590 = vsyncadd %s580, %s589
          %s591 = smul.addr %s35, 4
          %s592 = sadd.s32 %s587, %s591
          %s593 = smul.addr %s34, 12
          %s594 = sadd.s32 %s592, %s593
          %s595 = smul.addr %s594, 64
          %s596 = scalar_lea.hbm %s5, %s595
          %s597 = sshll.u32 %s583, 4
          %s598 = int_to_ptr.vmem [resolvable:$true] %s597
          %603 = dma.vmem_to_hbm [thread:$0]  %s598, 256, %s596, %s580, 64, 64, 4
        $region64: #{graph_convolution.2} parent=39 // pred_fallthru
          _
      $region40: #{graph_convolution.2} parent=5 // pred_fallthru
        _
      %p604 = scmp.le.s32.totalorder 2, %s24
      // Predicated region
      $region65: #{graph_convolution.2} parent=5 // pred_check
        %p605 = pneg %p604
      $region66: #{graph_convolution.2} parent=5 // pred_check_branch
        %607 = sbr.rel (%p605) target = $region68
      $region67: #{graph_convolution.2} parent=5 // pred_region
        %s608 = ssub.s32 %s24, 2
        // Predicated region
        $region69: #{graph_convolution.2} parent=67 // pred_check
          %p609 = pneg %p203
        $region70: #{graph_convolution.2} parent=67 // pred_check_branch
          %611 = sbr.rel (%p609) target = $region72
        $region71: #{graph_convolution.2} parent=67 // pred_region
          %s612 = sand.u32 %s188, 1
          %s613 = scalar_lea.sflag [#allocation4], %s612
          %s614 = sand.u32 %s188, 1
          %s615 = smul.addr %s614, 16
          %s616 = scalar_lea.vmem [#allocation12], %s615
          %617 = dma.done %s613, 256
        $region72: #{graph_convolution.2} parent=67 // pred_fallthru
          _
      $region68: #{graph_convolution.2} parent=5 // pred_fallthru
        _
    $region6: #{graph_convolution.2} parent=1 // loop_footer
      %s28 = sadd.s32 1, %s24
    $region7: #{graph_convolution.2} parent=1 // loop_footer_branch
      %23 = sbr.rel target = $region3
    $region8: #{graph_convolution.2} parent=1 // loop_exit
      _
    %618 = vsyncpa [#allocation3], 1
    %s619 = scalar_lea.sflag [#allocation3], 1
    %620 = vsyncpa %s619, 1
    %621 = vsyncpa [#allocation7], 1
    %s622 = scalar_lea.sflag [#allocation7], 1
    %623 = vsyncpa %s622, 1
    %624 = vsyncpa [#allocation11], 1
    %s625 = scalar_lea.sflag [#allocation11], 1
    %626 = vsyncpa %s625, 1
    %627 = vsyncpa [#allocation4], 1
    %s628 = scalar_lea.sflag [#allocation4], 1
    %629 = vsyncpa %s628, 1
    %630 = vsyncpa [#allocation5], 1
    %s631 = scalar_lea.sflag [#allocation5], 1
    %632 = vsyncpa %s631, 1

// kernel: graph_convolution.3
$region0: #{graph_convolution.3}
  #allocation0 [shape = 'u32[]', space=smem, size = 0x4, offset = 0x4, fixed_abs, tag = 'smem constant byte address 0x4 - core index']
  #allocation1 [shape = 'u32[144,128]{1,0:T(1,128)}', space=vmem, size = 0x12000, scoped, tag = 'internal scratch']
  %s0 = inlined_call_operand.hbm [shape: s8[2,3,32,32], index: 0, kind: input, shape index: {}]
  %s1 = inlined_call_operand.hbm [shape: bf16[2,3,32,128], index: 1, kind: input, shape index: {}]
  %s2 = inlined_call_operand.hbm [shape: f32[2,32,128], index: 2, kind: output, shape index: {}]
  %s3 = sld [smem:[#allocation0]]
  $region49: #{graph_convolution.3} parent=0
    _
  %s5 = ssub.s32 1, %s3
  %s6 = scalar_select 0, %s5, %s3
  $region1: #{graph_convolution.3} parent=0
    #allocation2 [shape = 'u8[24576]{0}', space=vmem, size = 0x6000, scoped, tag = 'input window, operand 0']
    #allocation3 [shape = 's32[2]{0}', space=sflag, size = 0x8, scoped, tag = 'scoped memory for graph_convolution.3']
    #allocation4 [shape = 's32[2]{0}', space=sflag, size = 0x8, scoped, tag = 'scoped memory for graph_convolution.3']
    #allocation5 [shape = 'u8[49152]{0}', space=vmem, size = 0xc000, scoped, tag = 'input window, operand 1']
    #allocation6 [shape = 's32[2]{0}', space=sflag, size = 0x8, scoped, tag = 'scoped memory for graph_convolution.3']
    #allocation7 [shape = 'u8[32768]{0}', space=vmem, size = 0x8000, scoped, tag = 'output window, operand 0']
    %7 = vsyncpa [#allocation3], 0
    %s8 = scalar_lea.sflag [#allocation3], 1
    %9 = vsyncpa %s8, 0
    %10 = vsyncpa [#allocation6], 0
    %s11 = scalar_lea.sflag [#allocation6], 1
    %12 = vsyncpa %s11, 0
    %13 = vsyncpa [#allocation4], 0
    %s14 = scalar_lea.sflag [#allocation4], 1
    %15 = vsyncpa %s14, 0
    loop: start=0, step=1, limit=4
    $region2: #{graph_convolution.3} parent=1 // loop_pre_header
      _
    $region3: #{graph_convolution.3} parent=1 // loop_header
      %s17 = sphi 0, %s21
      %p18 = scmp.ge.s32.totalorder %s17, 4
      %s24 = sphi 0, %s36
      %s25 = sphi 0, %s32
      %s26 = sphi 0, %s24
      %s27 = sphi 0, %s25
      %s28 = sphi 0, %s26
      %s29 = sphi 0, %s27
      %s41 = sphi 0, %s43
      %s44 = sphi 0, %s41
      %s45 = sphi 0, %s44
      %s61 = sphi 0, %s45
      %s67 = sphi 0, %s69
      %s70 = sphi 0, %s67
      %s71 = sphi 0, %s70
      %s87 = sphi 0, %s71
      %s95 = sphi 0, %s97
      %s98 = sphi 0, %s95
      %s99 = sphi 0, %s98
      %s115 = sphi 0, %s99
    $region4: #{graph_convolution.3} parent=1 // loop_header_branch
      %20 = sbr.rel (%p18) target = $region8
    $region5: #{graph_convolution.3} parent=1 // loop_body
      %s22 = ssub.s32 %s17, 1
      %s23 = ssub.s32 %s17, 2
      %s30 = sadd.s32 1, %s25
      %p31 = scmp.ge.s32.totalorder %s30, 1
      %s32 = scalar_select %p31, 0, %s30
      %s33 = sadd.s32 1, %s24
      %s34 = scalar_select %p31, %s33, %s24
      %p35 = scmp.ge.s32.totalorder %s34, 2
      %s36 = scalar_select %p35, 0, %s34
      %s37 = ssub.s32 %s24, %s36
      %s38 = ssub.s32 %s25, %s32
      %s39 = sor.u32 %s37, %s38
      %p40 = scmp.eq.s32.totalorder %s39, 0
      %s42 = sadd.s32 %s41, 1
      %s43 = scalar_select %p40, %s41, %s42
      %p46 = pneg %p40
      %p47 = scmp.eq.s32.totalorder %s17, 1
      %p48 = por %p46, %p47
      %p49 = scmp.ne.s32.totalorder %s41, %s44
      %p50 = scmp.eq.s32.totalorder %s17, 0
      %p51 = por %p49, %p50
      %p52 = scmp.ne.s32.totalorder %s41, %s44
      %p53 = scmp.eq.s32.totalorder %s22, 1
      %p54 = por %p52, %p53
      %p55 = scmp.ne.s32.totalorder %s44, %s45
      %p56 = scmp.eq.s32.totalorder %s22, 0
      %p57 = por %p55, %p56
      %p58 = scmp.ne.s32.totalorder %s44, %s45
      %p59 = scmp.eq.s32.totalorder %s23, 1
      %p60 = por %p58, %p59
      %p62 = scmp.ne.s32.totalorder %s45, %s61
      %p63 = scmp.eq.s32.totalorder %s23, 0
      %p64 = por %p62, %p63
      %s65 = ssub.s32 %s24, %s36
      %p66 = scmp.eq.s32.totalorder %s65, 0
      %s68 = sadd.s32 %s67, 1
      %s69 = scalar_select %p66, %s67, %s68
      %p72 = pneg %p66
      %p73 = scmp.eq.s32.totalorder %s17, 1
      %p74 = por %p72, %p73
      %p75 = scmp.ne.s32.totalorder %s67, %s70
      %p76 = scmp.eq.s32.totalorder %s17, 0
      %p77 = por %p75, %p76
      %p78 = scmp.ne.s32.totalorder %s67, %s70
      %p79 = scmp.eq.s32.totalorder %s22, 1
      %p80 = por %p78, %p79
      %p81 = scmp.ne.s32.totalorder %s70, %s71
      %p82 = scmp.eq.s32.totalorder %s22, 0
      %p83 = por %p81, %p82
      %p84 = scmp.ne.s32.totalorder %s70, %s71
      %p85 = scmp.eq.s32.totalorder %s23, 1
      %p86 = por %p84, %p85
      %p88 = scmp.ne.s32.totalorder %s71, %s87
      %p89 = scmp.eq.s32.totalorder %s23, 0
      %p90 = por %p88, %p89
      %s91 = ssub.s32 %s24, %s36
      %s92 = ssub.s32 %s25, %s32
      %s93 = sor.u32 %s91, %s92
      %p94 = scmp.eq.s32.totalorder %s93, 0
      %s96 = sadd.s32 %s95, 1
      %s97 = scalar_select %p94, %s95, %s96
      %p100 = pneg %p94
      %p101 = scmp.eq.s32.totalorder %s17, 1
      %p102 = por %p100, %p101
      %p103 = scmp.ne.s32.totalorder %s95, %s98
      %p104 = scmp.eq.s32.totalorder %s17, 0
      %p105 = por %p103, %p104
      %p106 = scmp.ne.s32.totalorder %s95, %s98
      %p107 = scmp.eq.s32.totalorder %s22, 1
      %p108 = por %p106, %p107
      %p109 = scmp.ne.s32.totalorder %s98, %s99
      %p110 = scmp.eq.s32.totalorder %s22, 0
      %p111 = por %p109, %p110
      %p112 = scmp.ne.s32.totalorder %s98, %s99
      %p113 = scmp.eq.s32.totalorder %s23, 1
      %p114 = por %p112, %p113
      %p116 = scmp.ne.s32.totalorder %s99, %s115
      %p117 = scmp.eq.s32.totalorder %s23, 0
      %p118 = por %p116, %p117
      %p119 = scmp.le.s32.totalorder 1, %s17
      %p120 = scmp.lt.s32.totalorder %s17, 3
      %p121 = pnand %p119, %p120
      %p122 = pneg %p121
      // Predicated region
      $region9: #{graph_convolution.3} parent=5 // pred_check
        _
      $region10: #{graph_convolution.3} parent=5 // pred_check_branch
        %124 = sbr.rel (%p121) target = $region12
      $region11: #{graph_convolution.3} parent=5 // pred_region
        %s125 = ssub.s32 %s17, 1
      $region12: #{graph_convolution.3} parent=5 // pred_fallthru
        _
      %p126 = scmp.lt.s32.totalorder %s17, 2
      // Predicated region
      $region13: #{graph_convolution.3} parent=5 // pred_check
        %p127 = pneg %p126
      $region14: #{graph_convolution.3} parent=5 // pred_check_branch
        %129 = sbr.rel (%p127) target = $region16
      $region15: #{graph_convolution.3} parent=5 // pred_region
        // Predicated region
        $region17: #{graph_convolution.3} parent=15 // pred_check
          %p130 = pneg %p51
        $region18: #{graph_convolution.3} parent=15 // pred_check_branch
          %132 = sbr.rel (%p130) target = $region20
        $region19: #{graph_convolution.3} parent=15 // pred_region
          %s133 = sand.u32 %s41, 1
          %s134 = scalar_lea.sflag [#allocation3], %s133
          %s135 = sand.u32 %s41, 1
          %s136 = smul.addr %s135, 24
          %s137 = scalar_lea.vmem [#allocation2], %s136
          %s139 = ssub.s32 384, 384
          %140 = vsyncadd %s134, %s139
          %s141 = smul.addr %s24, 3
          %s142 = sadd.s32 %s25, %s141
          %s143 = smul.addr %s142, 128
          %s144 = scalar_lea.hbm %s0, %s143
          %s145 = sshll.u32 %s137, 4
          %s146 = int_to_ptr.vmem [resolvable:$true] %s145
          %151 = dma.hbm_to_vmem [thread:$0]  %s144, 384, %s146, %s134, 128, 128, 8
        $region20: #{graph_convolution.3} parent=15 // pred_fallthru
          _
        // Predicated region
        $region21: #{graph_convolution.3} parent=15 // pred_check
          %p152 = pneg %p77
        $region22: #{graph_convolution.3} parent=15 // pred_check_branch
          %154 = sbr.rel (%p152) target = $region24
        $region23: #{graph_convolution.3} parent=15 // pred_region
          %s155 = sand.u32 %s67, 1
          %s156 = scalar_lea.sflag [#allocation6], %s155
          %s157 = sand.u32 %s67, 1
          %s158 = smul.addr %s157, 48
          %s159 = scalar_lea.vmem [#allocation5], %s158
          %s161 = ssub.s32 768, 768
          %162 = vsyncadd %s156, %s161
          %s163 = smul.addr %s24, 12
          %s164 = smul.addr %s163, 64
          %s165 = scalar_lea.hbm %s1, %s164
          %s166 = sshll.u32 %s159, 4
          %s167 = int_to_ptr.vmem [resolvable:$true] %s166
          %172 = dma.hbm_to_vmem [thread:$0]  %s165, 768, %s167, %s156, 64, 64, 4
        $region24: #{graph_convolution.3} parent=15 // pred_fallthru
          _
      $region16: #{graph_convolution.3} parent=5 // pred_fallthru
        _
      %p173 = scmp.le.s32.totalorder 1, %s17
      %p174 = scmp.lt.s32.totalorder %s17, 3
      %p175 = pnand %p173, %p174
      %p176 = pneg %p175
      // Predicated region
      $region25: #{graph_convolution.3} parent=5 // pred_check
        _
      $region26: #{graph_convolution.3} parent=5 // pred_check_branch
        %178 = sbr.rel (%p175) target = $region28
      $region27: #{graph_convolution.3} parent=5 // pred_region
        %s179 = ssub.s32 %s17, 1
        %s180 = sand.u32 %s44, 1
        %s181 = scalar_lea.sflag [#allocation3], %s180
        %s182 = sand.u32 %s44, 1
        %s183 = smul.addr %s182, 24
        %s184 = scalar_lea.vmem [#allocation2], %s183
        // Predicated region
        $region29: #{graph_convolution.3} parent=27 // pred_check
          %p185 = pneg %p57
        $region30: #{graph_convolution.3} parent=27 // pred_check_branch
          %187 = sbr.rel (%p185) target = $region32
        $region31: #{graph_convolution.3} parent=27 // pred_region
          %188 = dma.done %s181, 384
        $region32: #{graph_convolution.3} parent=27 // pred_fallthru
          _
        %s189 = sand.u32 %s70, 1
        %s190 = scalar_lea.sflag [#allocation6], %s189
        %s191 = sand.u32 %s70, 1
        %s192 = smul.addr %s191, 48
        %s193 = scalar_lea.vmem [#allocation5], %s192
        // Predicated region
        $region33: #{graph_convolution.3} parent=27 // pred_check
          %p194 = pneg %p83
        $region34: #{graph_convolution.3} parent=27 // pred_check_branch
          %196 = sbr.rel (%p194) target = $region36
        $region35: #{graph_convolution.3} parent=27 // pred_region
          %197 = dma.done %s190, 768
        $region36: #{graph_convolution.3} parent=27 // pred_fallthru
          _
        %s198 = sand.u32 %s44, 1
        %s199 = scalar_lea.sflag [#allocation3], %s198
        %s200 = sand.u32 %s44, 1
        %s201 = smul.addr %s200, 24
        %s202 = scalar_lea.vmem [#allocation2], %s201
        %p203 = pneg %p57
        %p204 = pneg %p54
        %s205 = sand.u32 %s70, 1
        %s206 = scalar_lea.sflag [#allocation6], %s205
        %s207 = sand.u32 %s70, 1
        %s208 = smul.addr %s207, 48
        %s209 = scalar_lea.vmem [#allocation5], %s208
        %p210 = pneg %p83
        %p211 = pneg %p80
        %p212 = pneg %p111
        %p213 = pneg %p108
        %s214 = sand.u32 %s98, 1
        %s215 = scalar_lea.sflag [#allocation4], %s214
        %s216 = sand.u32 %s98, 1
        %s217 = smul.addr %s216, 32
        %s218 = scalar_lea.vmem [#allocation7], %s217
        %s219 = smul.u32 4, %s27
        %v221 = vld [vmem:[%s184] sm:$0xff]
        %v222 = vunpack.c.l.s8.bf16 %v221
        %v223 = vunpack.c.h.s8.bf16 %v221
        %v224 = vld [vmem:[%s193] sm:$0xf]
        %v225 = vld [vmem:[%s193 + $0x4] sm:$0xf]
        %v226 = vld [vmem:[%s193 + $0x8] sm:$0xf]
        %v227 = vld [vmem:[%s193 + $0xc] sm:$0xf]
        %s228 = scalar_lea.vmem %s184, 8 [#allocation2]
        %v229 = vld [vmem:[%s228] sm:$0xff]
        %v230 = vunpack.c.l.s8.bf16 %v229
        %v231 = vunpack.c.h.s8.bf16 %v229
        %s232 = scalar_lea.vmem %s193, 16 [#allocation5]
        %v233 = vld [vmem:[%s232] sm:$0xf]
        %v234 = vld [vmem:[%s232 + $0x4] sm:$0xf]
        %v235 = vld [vmem:[%s232 + $0x8] sm:$0xf]
        %v236 = vld [vmem:[%s232 + $0xc] sm:$0xf]
        %v241 = vunpack.c.l.b16 %v233
        %v242 = vunpack.c.l.b16 %v234
        %v243 = vunpack.c.l.b16 %v235
        %v244 = vunpack.c.l.b16 %v236
        %v245 = vpack.c.b16 %v242, %v241
        %v246 = vpack.c.b16 %v244, %v243
        %vm249 = vcmask 261120
        %v251 = vsel %vm249, %v230, 0
        %v254 = vsel %vm249, %v231, 0
        %256 = vmatprep.subr.bf16.mxu0 0
        %257 = vmatpush1.bf16.msra.mxu0 %v245
        %258 = vmatprep.subr.bf16.mxu0 0
        %259 = vmatpush1.bf16.msra.mxu0 %v246
        %260 = vmatprep.subr.bf16.mxu0 0
        %261 = vmatpush1.bf16.msra.mxu0 0
        %262 = vmatprep.subr.bf16.mxu0 0
        %263 = vmatpush1.bf16.msra.mxu0 0
        %264 = vmatprep.subr.bf16.mxu0 0
        %265 = vmatpush1.bf16.msra.mxu0 0
        %266 = vmatprep.subr.bf16.mxu0 0
        %267 = vmatpush1.bf16.msra.mxu0 0
        %268 = vmatprep.subr.bf16.mxu0 0
        %269 = vmatpush1.bf16.msra.mxu0 0
        %270 = vmatprep.subr.bf16.mxu0 0
        %271 = vmatpush1.bf16.msra.mxu0 0
        %272 = vmatprep.subr.bf16.mxu0 0
        %273 = vmatpush1.bf16.msra.mxu0 0
        %274 = vmatprep.subr.bf16.mxu0 0
        %275 = vmatpush1.bf16.msra.mxu0 0
        %276 = vmatprep.subr.bf16.mxu0 0
        %277 = vmatpush1.bf16.msra.mxu0 0
        %278 = vmatprep.subr.bf16.mxu0 0
        %279 = vmatpush1.bf16.msra.mxu0 0
        %280 = vmatprep.subr.bf16.mxu0 0
        %281 = vmatpush1.bf16.msra.mxu0 0
        %282 = vmatprep.subr.bf16.mxu0 0
        %283 = vmatpush1.bf16.msra.mxu0 0
        %284 = vmatprep.subr.bf16.mxu0 0
        %285 = vmatpush1.bf16.msra.mxu0 0
        %286 = vmatprep.subr.bf16.mxu0 0
        %287 = vmatpush1.bf16.msra.mxu0 0
        %288 = vmatprep.mubr.bf16.mxu0 0
        %289 = vmatmul.mubr.bf16.gmra.mrb[0].mxu0 %v251
        %v290 = vpop.f32.mrb[0].mxu0
        %v291 = vadd.f32 0.0, %v290
        %v292 = vpop.f32.mrb[0].mxu0
        %v293 = vpop.f32.mrb[0].mxu0
        %v294 = vadd.f32 0.0, %v293
        %v295 = vpop.f32.mrb[0].mxu0
        %296 = vmatprep.mubr.bf16.mxu0 0
        %297 = vmatmul.mubr.bf16.gmra.mrb[0].mxu0 %v254
        %v298 = vpop.f32.mrb[0].mxu0
        %v299 = vadd.f32 0.0, %v298
        %v300 = vpop.f32.mrb[0].mxu0
        %v301 = vpop.f32.mrb[0].mxu0
        %v302 = vadd.f32 0.0, %v301
        %v303 = vpop.f32.mrb[0].mxu0
        %304 = vdwg.mxu0
        %v309 = vunpack.c.l.b16 %v224
        %v310 = vunpack.c.l.b16 %v225
        %v311 = vunpack.c.l.b16 %v226
        %v312 = vunpack.c.l.b16 %v227
        %v313 = vpack.c.b16 %v310, %v309
        %v314 = vpack.c.b16 %v312, %v311
        %v318 = vsel %vm249, %v222, 0
        %v321 = vsel %vm249, %v223, 0
        %323 = vmatprep.subr.bf16.mxu0 0
        %324 = vmatpush1.bf16.msra.mxu0 %v313
        %325 = vmatprep.subr.bf16.mxu0 0
        %326 = vmatpush1.bf16.msra.mxu0 %v314
        %327 = vmatprep.subr.bf16.mxu0 0
        %328 = vmatpush1.bf16.msra.mxu0 0
        %329 = vmatprep.subr.bf16.mxu0 0
        %330 = vmatpush1.bf16.msra.mxu0 0
        %331 = vmatprep.subr.bf16.mxu0 0
        %332 = vmatpush1.bf16.msra.mxu0 0
        %333 = vmatprep.subr.bf16.mxu0 0
        %334 = vmatpush1.bf16.msra.mxu0 0
        %335 = vmatprep.subr.bf16.mxu0 0
        %336 = vmatpush1.bf16.msra.mxu0 0
        %337 = vmatprep.subr.bf16.mxu0 0
        %338 = vmatpush1.bf16.msra.mxu0 0
        %339 = vmatprep.subr.bf16.mxu0 0
        %340 = vmatpush1.bf16.msra.mxu0 0
        %341 = vmatprep.subr.bf16.mxu0 0
        %342 = vmatpush1.bf16.msra.mxu0 0
        %343 = vmatprep.subr.bf16.mxu0 0
        %344 = vmatpush1.bf16.msra.mxu0 0
        %345 = vmatprep.subr.bf16.mxu0 0
        %346 = vmatpush1.bf16.msra.mxu0 0
        %347 = vmatprep.subr.bf16.mxu0 0
        %348 = vmatpush1.bf16.msra.mxu0 0
        %349 = vmatprep.subr.bf16.mxu0 0
        %350 = vmatpush1.bf16.msra.mxu0 0
        %351 = vmatprep.subr.bf16.mxu0 0
        %352 = vmatpush1.bf16.msra.mxu0 0
        %353 = vmatprep.subr.bf16.mxu0 0
        %354 = vmatpush1.bf16.msra.mxu0 0
        %355 = vmatprep.mubr.bf16.mxu0 0
        %356 = vmatmul.mubr.bf16.gmra.mrb[0].mxu0 %v318
        %v357 = vpop.f32.mrb[0].mxu0
        %v358 = vadd.f32 %v291, %v357
        %v359 = vpop.f32.mrb[0].mxu0
        %v360 = vpop.f32.mrb[0].mxu0
        %v361 = vadd.f32 %v294, %v360
        %v362 = vpop.f32.mrb[0].mxu0
        %363 = vmatprep.mubr.bf16.mxu0 0
        %364 = vmatmul.mubr.bf16.gmra.mrb[0].mxu0 %v321
        %v365 = vpop.f32.mrb[0].mxu0
        %v366 = vadd.f32 %v299, %v365
        %v367 = vpop.f32.mrb[0].mxu0
        %v368 = vpop.f32.mrb[0].mxu0
        %v369 = vadd.f32 %v302, %v368
        %v370 = vpop.f32.mrb[0].mxu0
        %371 = vdwg.mxu0
        %s372 = scalar_lea.vmem %s184, 16 [#allocation2]
        %v373 = vld [vmem:[%s372] sm:$0xff]
        %v374 = vunpack.c.l.s8.bf16 %v373
        %v375 = vunpack.c.h.s8.bf16 %v373
        %s376 = scalar_lea.vmem %s193, 32 [#allocation5]
        %v377 = vld [vmem:[%s376] sm:$0xf]
        %v378 = vld [vmem:[%s376 + $0x4] sm:$0xf]
        %v379 = vld [vmem:[%s376 + $0x8] sm:$0xf]
        %v380 = vld [vmem:[%s376 + $0xc] sm:$0xf]
        %v385 = vunpack.c.l.b16 %v377
        %v386 = vunpack.c.l.b16 %v378
        %v387 = vunpack.c.l.b16 %v379
        %v388 = vunpack.c.l.b16 %v380
        %v389 = vpack.c.b16 %v386, %v385
        %v390 = vpack.c.b16 %v388, %v387
        %v394 = vsel %vm249, %v374, 0
        %v397 = vsel %vm249, %v375, 0
        %399 = vmatprep.subr.bf16.mxu0 0
        %400 = vmatpush1.bf16.msra.mxu0 %v389
        %401 = vmatprep.subr.bf16.mxu0 0
        %402 = vmatpush1.bf16.msra.mxu0 %v390
        %403 = vmatprep.subr.bf16.mxu0 0
        %404 = vmatpush1.bf16.msra.mxu0 0
        %405 = vmatprep.subr.bf16.mxu0 0
        %406 = vmatpush1.bf16.msra.mxu0 0
        %407 = vmatprep.subr.bf16.mxu0 0
        %408 = vmatpush1.bf16.msra.mxu0 0
        %409 = vmatprep.subr.bf16.mxu0 0
        %410 = vmatpush1.bf16.msra.mxu0 0
        %411 = vmatprep.subr.bf16.mxu0 0
        %412 = vmatpush1.bf16.msra.mxu0 0
        %413 = vmatprep.subr.bf16.mxu0 0
        %414 = vmatpush1.bf16.msra.mxu0 0
        %415 = vmatprep.subr.bf16.mxu0 0
        %416 = vmatpush1.bf16.msra.mxu0 0
        %417 = vmatprep.subr.bf16.mxu0 0
        %418 = vmatpush1.bf16.msra.mxu0 0
        %419 = vmatprep.subr.bf16.mxu0 0
        %420 = vmatpush1.bf16.msra.mxu0 0
        %421 = vmatprep.subr.bf16.mxu0 0
        %422 = vmatpush1.bf16.msra.mxu0 0
        %423 = vmatprep.subr.bf16.mxu0 0
        %424 = vmatpush1.bf16.msra.mxu0 0
        %425 = vmatprep.subr.bf16.mxu0 0
        %426 = vmatpush1.bf16.msra.mxu0 0
        %427 = vmatprep.subr.bf16.mxu0 0
        %428 = vmatpush1.bf16.msra.mxu0 0
        %429 = vmatprep.subr.bf16.mxu0 0
        %430 = vmatpush1.bf16.msra.mxu0 0
        %431 = vmatprep.mubr.bf16.mxu0 0
        %432 = vmatmul.mubr.bf16.gmra.mrb[0].mxu0 %v394
        %v433 = vpop.f32.mrb[0].mxu0
        %v434 = vadd.f32 0.0, %v433
        %v435 = vpop.f32.mrb[0].mxu0
        %v436 = vpop.f32.mrb[0].mxu0
        %v437 = vadd.f32 0.0, %v436
        %v438 = vpop.f32.mrb[0].mxu0
        %439 = vmatprep.mubr.bf16.mxu0 0
        %440 = vmatmul.mubr.bf16.gmra.mrb[0].mxu0 %v397
        %v441 = vpop.f32.mrb[0].mxu0
        %v442 = vadd.f32 0.0, %v441
        %v443 = vpop.f32.mrb[0].mxu0
        %v444 = vpop.f32.mrb[0].mxu0
        %v445 = vadd.f32 0.0, %v444
        %v446 = vpop.f32.mrb[0].mxu0
        %447 = vdwg.mxu0
        %v448 = vadd.f32 %v358, %v434
        %v449 = vadd.f32 %v361, %v437
        %v450 = vadd.f32 %v366, %v442
        %v451 = vadd.f32 %v369, %v445
        %v452 = vmax.f32 %v448, 0.0
        %v453 = vmax.f32 %v449, 0.0
        %v454 = vmax.f32 %v450, 0.0
        %v455 = vmax.f32 %v451, 0.0
        %456 = vst [vmem:[%s218] sm:$0xff] %v452
        %457 = vst [vmem:[%s218 + $0x8] sm:$0xff] %v453
        %458 = vst [vmem:[%s218 + $0x10] sm:$0xff] %v454
        %459 = vst [vmem:[%s218 + $0x18] sm:$0xff] %v455
        %s460 = sand.u32 %s98, 1
        %s461 = scalar_lea.sflag [#allocation4], %s460
        %s462 = sand.u32 %s98, 1
        %s463 = smul.addr %s462, 32
        %s464 = scalar_lea.vmem [#allocation7], %s463
        // Predicated region
        $region37: #{graph_convolution.3} parent=27 // pred_check
          %p465 = pneg %p108
        $region38: #{graph_convolution.3} parent=27 // pred_check_branch
          %467 = sbr.rel (%p465) target = $region40
        $region39: #{graph_convolution.3} parent=27 // pred_region
          %s468 = smul.u32 4, %s27
          %s470 = ssub.s32 512, 512
          %471 = vsyncadd %s461, %s470
          %s472 = smul.addr %s26, 4
          %s473 = sadd.s32 %s468, %s472
          %s474 = smul.addr %s473, 128
          %s475 = scalar_lea.hbm %s2, %s474
          %s476 = sshll.u32 %s464, 4
          %s477 = int_to_ptr.vmem [resolvable:$true] %s476
          %482 = dma.vmem_to_hbm [thread:$0]  %s477, 512, %s475, %s461, 128, 128, 8
        $region40: #{graph_convolution.3} parent=27 // pred_fallthru
          _
      $region28: #{graph_convolution.3} parent=5 // pred_fallthru
        _
      %p483 = scmp.le.s32.totalorder 2, %s17
      // Predicated region
      $region41: #{graph_convolution.3} parent=5 // pred_check
        %p484 = pneg %p483
      $region42: #{graph_convolution.3} parent=5 // pred_check_branch
        %486 = sbr.rel (%p484) target = $region44
      $region43: #{graph_convolution.3} parent=5 // pred_region
        %s487 = ssub.s32 %s17, 2
        // Predicated region
        $region45: #{graph_convolution.3} parent=43 // pred_check
          %p488 = pneg %p114
        $region46: #{graph_convolution.3} parent=43 // pred_check_branch
          %490 = sbr.rel (%p488) target = $region48
        $region47: #{graph_convolution.3} parent=43 // pred_region
          %s491 = sand.u32 %s99, 1
          %s492 = scalar_lea.sflag [#allocation4], %s491
          %s493 = sand.u32 %s99, 1
          %s494 = smul.addr %s493, 32
          %s495 = scalar_lea.vmem [#allocation7], %s494
          %496 = dma.done %s492, 512
        $region48: #{graph_convolution.3} parent=43 // pred_fallthru
          _
      $region44: #{graph_convolution.3} parent=5 // pred_fallthru
        _
    $region6: #{graph_convolution.3} parent=1 // loop_footer
      %s21 = sadd.s32 1, %s17
    $region7: #{graph_convolution.3} parent=1 // loop_footer_branch
      %16 = sbr.rel target = $region3
    $region8: #{graph_convolution.3} parent=1 // loop_exit
      _
    %497 = vsyncpa [#allocation3], 1
    %s498 = scalar_lea.sflag [#allocation3], 1
    %499 = vsyncpa %s498, 1
    %500 = vsyncpa [#allocation6], 1
    %s501 = scalar_lea.sflag [#allocation6], 1
    %502 = vsyncpa %s501, 1
    %503 = vsyncpa [#allocation4], 1
    %s504 = scalar_lea.sflag [#allocation4], 1
    %505 = vsyncpa %s504, 1

</llo_original>
